<compile_context>
chip_gen: v7x
topology: tpu7x:2x2x1
jax: 0.10.0
libtpu: 0.0.40
codegen_flags: <defaults>
</compile_context>

<pallas_src>
import functools
import math

import jax
import jax.numpy as jnp
from jax.experimental import pallas as pl
from jax.experimental.pallas import tpu as pltpu

_EPS = 1e-8


# ---------------------------------------------------------------------------
# Fused stacked-NALU kernel
# ---------------------------------------------------------------------------
def _make_stacked_nalu_kernel(n_layers, eps):
    """Build a kernel that applies `n_layers` NALU layers to one batch tile.

    Kernel refs: (x_ref, wg_ref_0, ..., wg_ref_{n-1}, y_ref) where
    wg_ref_l holds [W_l | G_l] of shape (d_in_l, d_out_l + 1), with
    W_l = tanh(W_hat_l) * sigmoid(M_hat_l) precomputed in the wrapper.
    """

    def kernel(x_ref, *rest):
        wg_refs = rest[:n_layers]
        y_ref = rest[n_layers]

        h = x_ref[...].astype(jnp.float32)          # (tb, d_in)
        tb = h.shape[0]

        for l in range(n_layers):                   # static unroll over layers
            wg = wg_refs[l][...].astype(jnp.float32)  # (d_in, d_out + 1), VMEM-resident
            d_out = wg.shape[1] - 1

            logh = jnp.log(jnp.abs(h) + eps)        # (tb, d_in)
            # One MXU pass for additive path, multiplicative (log) path and gate:
            #   [h ; log|h|] @ [W | G]  -> (2*tb, d_out + 1)
            z = jnp.concatenate([h, logh], axis=0)
            s = jnp.dot(z, wg, preferred_element_type=jnp.float32)

            a = s[:tb, :d_out]                      # h @ W
            g = jax.nn.sigmoid(s[:tb, d_out:])      # sigmoid(h @ G), (tb, 1)
            m = jnp.exp(s[tb:, :d_out])             # exp(log|h| @ W)

            h = g * a + (1.0 - g) * m               # stays in vregs/VMEM

        y_ref[...] = h.astype(y_ref.dtype)

    return kernel


def _pick_batch_tile(batch, cap):
    """Largest divisor of `batch` that is <= cap, preferring multiples of 8."""
    cap = max(1, min(cap, batch))
    start = cap - (cap % 8)
    for tb in range(start, 0, -8):
        if batch % tb == 0:
            return tb
    for tb in range(cap, 0, -1):
        if batch % tb == 0:
            return tb
    return batch


def stacked_nalu_pallas(x, params, *, batch_tile=256):
    """Run the whole NALU stack in one pallas_call.

    params: list of dicts with keys "G" (d_in, 1), "W_hat" (d_in, d_out),
            "M_hat" (d_in, d_out).
    """
    B, in_dim = x.shape
    n_layers = len(params)
    out_dim = params[-1]["W_hat"].shape[1]

    # Hoist the weight transform out of the kernel: done once per forward,
    # and fuse the gate column so each layer needs a single matmul.
    wgs = []
    for p in params:
        W = jnp.tanh(p["W_hat"]) * jax.nn.sigmoid(p["M_hat"])
        wgs.append(jnp.concatenate([W, p["G"]], axis=1).astype(jnp.float32))

    tb = _pick_batch_tile(B, batch_tile)

    in_specs = [pl.BlockSpec((tb, in_dim), lambda i: (i, 0))]
    for wg in wgs:
        d_in_l, d_out1_l = wg.shape
        # Constant index_map -> weight block stays resident in VMEM across tiles.
        in_specs.append(pl.BlockSpec((d_in_l, d_out1_l), lambda i: (0, 0)))

    kernel = _make_stacked_nalu_kernel(n_layers, _EPS)

    return pl.pallas_call(
        kernel,
        out_shape=jax.ShapeDtypeStruct((B, out_dim), x.dtype),
        grid_spec=pltpu.PrefetchScalarGridSpec(
            num_scalar_prefetch=0,
            grid=(B // tb,),
            in_specs=in_specs,
            out_specs=pl.BlockSpec((tb, out_dim), lambda i: (i, 0)),
        ),
        compiler_params=pltpu.CompilerParams(
            dimension_semantics=("parallel",)
        ),
    )(x, *wgs)


# ---------------------------------------------------------------------------
# Parameter init (matches nn.init.xavier_uniform_)
# ---------------------------------------------------------------------------
def xavier_uniform(key, shape, dtype=jnp.float32):
    fan_in, fan_out = shape
    bound = math.sqrt(6.0 / (fan_in + fan_out))
    return jax.random.uniform(key, shape, dtype, minval=-bound, maxval=bound)


def init_stacked_nalu_params(key, n_layers, in_dim, out_dim, hidden_dim):
    params = []
    for i in range(n_layers):
        d_in = in_dim if i == 0 else hidden_dim
        d_out = out_dim if i == n_layers - 1 else hidden_dim
        key, kg, kw, km = jax.random.split(key, 4)
        params.append(
            dict(
                G=xavier_uniform(kg, (d_in, 1)),
                W_hat=xavier_uniform(kw, (d_in, d_out)),
                M_hat=xavier_uniform(km, (d_in, d_out)),
            )
        )
    return params


@jax.jit
def stacked_nalu_forward(x, params):
    return stacked_nalu_pallas(x, params)


def _reference_forward(x, params):
    """Pure-JAX reference matching the PyTorch semantics."""
    y = x
    for p in params:
        W = jnp.tanh(p["W_hat"]) * jax.nn.sigmoid(p["M_hat"])
        g = jax.nn.sigmoid(y @ p["G"])
        a = y @ W
        m = jnp.exp(jnp.log(jnp.abs(y) + _EPS) @ W)
        y = g * a + (1.0 - g) * m
    return y


if __name__ == "__main__":
    key = jax.random.PRNGKey(0)
    n_layers, in_dim, hidden_dim, out_dim = 3, 16, 32, 8
    batch = 8

    key, kx, kp = jax.random.split(key, 3)
    x = jax.random.normal(kx, (batch, in_dim), dtype=jnp.float32)
    params = init_stacked_nalu_params(kp, n_layers, in_dim, out_dim, hidden_dim)

    y = stacked_nalu_forward(x, params)
    jax.block_until_ready(y)

    y_ref = _reference_forward(x, params)
    assert y.shape == (batch, out_dim)
    assert jnp.allclose(y, y_ref, atol=1e-4, rtol=1e-4), (
        float(jnp.max(jnp.abs(y - y_ref)))
    )

    print("KERNEL_OK")
</pallas_src>

<mosaic_0001>
module attributes {stable_mosaic.version = 11 : i64} {
  func.func @kernel(%arg0: i32, %arg1: memref<8x16xf32, #tpu.memory_space<vmem>>, %arg2: memref<16x33xf32, #tpu.memory_space<vmem>>, %arg3: memref<32x33xf32, #tpu.memory_space<vmem>>, %arg4: memref<32x9xf32, #tpu.memory_space<vmem>>, %arg5: memref<8x8xf32, #tpu.memory_space<vmem>>) attributes {dimension_semantics = [#tpu.dimension_semantics<parallel>], iteration_bounds = array<i64: 1>, scalar_prefetch = 0 : i64, scratch_operands = 0 : i64, tpu.core_type = #tpu.core_type<tc>, window_params = [{transform_indices = @transform_0, window_bounds = array<i64: 8, 16>}, {pipeline_mode = #tpu.pipeline_mode<synchronous>, transform_indices = @transform_1, window_bounds = array<i64: 16, 33>}, {pipeline_mode = #tpu.pipeline_mode<synchronous>, transform_indices = @transform_2, window_bounds = array<i64: 32, 33>}, {pipeline_mode = #tpu.pipeline_mode<synchronous>, transform_indices = @transform_3, window_bounds = array<i64: 32, 9>}, {transform_indices = @transform_4, window_bounds = array<i64: 8, 8>}]} {
    %c0 = arith.constant 0 : index
    %c0_0 = arith.constant 0 : index
    %0 = vector.load %arg1[%c0, %c0_0] : memref<8x16xf32, #tpu.memory_space<vmem>>, vector<8x16xf32>
    %c0_1 = arith.constant 0 : index
    %c0_2 = arith.constant 0 : index
    %1 = vector.load %arg2[%c0_1, %c0_2] : memref<16x33xf32, #tpu.memory_space<vmem>>, vector<16x33xf32>
    %2 = math.absf %0 : vector<8x16xf32>
    %cst = arith.constant 9.99999993E-9 : f32
    %3 = vector.broadcast %cst : f32 to vector<8x16xf32>
    %4 = arith.addf %2, %3 : vector<8x16xf32>
    %5 = math.log %4 : vector<8x16xf32>
    %6 = tpu.concatenate %0, %5 in 0 : vector<8x16xf32>, vector<8x16xf32> -> vector<16x16xf32>
    %cst_3 = arith.constant dense<0.000000e+00> : vector<16x33xf32>
    %7 = tpu.matmul %6, %1, %cst_3 {dimension_numbers = #tpu.dot_dimension_numbers<[1], [0], [0], [1], [0, 0, 1, 1], [], []>} : vector<16x16xf32>, vector<16x33xf32>, vector<16x33xf32> -> vector<16x33xf32>
    %8 = vector.extract_strided_slice %7 {offsets = [0, 0], sizes = [8, 32], strides = [1, 1]} : vector<16x33xf32> to vector<8x32xf32>
    %9 = vector.extract_strided_slice %7 {offsets = [0, 32], sizes = [8, 1], strides = [1, 1]} : vector<16x33xf32> to vector<8x1xf32>
    %10 = arith.negf %9 : vector<8x1xf32>
    %11 = math.exp %10 : vector<8x1xf32>
    %cst_4 = arith.constant 1.000000e+00 : f32
    %12 = vector.broadcast %cst_4 : f32 to vector<8x1xf32>
    %13 = arith.addf %12, %11 : vector<8x1xf32>
    %14 = arith.divf %12, %13 : vector<8x1xf32>
    %15 = vector.extract_strided_slice %7 {offsets = [8, 0], sizes = [8, 32], strides = [1, 1]} : vector<16x33xf32> to vector<8x32xf32>
    %16 = math.exp %15 : vector<8x32xf32>
    %17 = vector.broadcast %14 : vector<8x1xf32> to vector<8x32xf32>
    %18 = arith.mulf %17, %8 : vector<8x32xf32>
    %cst_5 = arith.constant 1.000000e+00 : f32
    %19 = vector.broadcast %cst_5 : f32 to vector<8x1xf32>
    %20 = arith.subf %19, %14 : vector<8x1xf32>
    %21 = vector.broadcast %20 : vector<8x1xf32> to vector<8x32xf32>
    %22 = arith.mulf %21, %16 : vector<8x32xf32>
    %23 = arith.addf %18, %22 : vector<8x32xf32>
    %c0_6 = arith.constant 0 : index
    %c0_7 = arith.constant 0 : index
    %24 = vector.load %arg3[%c0_6, %c0_7] : memref<32x33xf32, #tpu.memory_space<vmem>>, vector<32x33xf32>
    %25 = math.absf %23 : vector<8x32xf32>
    %cst_8 = arith.constant 9.99999993E-9 : f32
    %26 = vector.broadcast %cst_8 : f32 to vector<8x32xf32>
    %27 = arith.addf %25, %26 : vector<8x32xf32>
    %28 = math.log %27 : vector<8x32xf32>
    %29 = tpu.concatenate %23, %28 in 0 : vector<8x32xf32>, vector<8x32xf32> -> vector<16x32xf32>
    %cst_9 = arith.constant dense<0.000000e+00> : vector<16x33xf32>
    %30 = tpu.matmul %29, %24, %cst_9 {dimension_numbers = #tpu.dot_dimension_numbers<[1], [0], [0], [1], [0, 0, 1, 1], [], []>} : vector<16x32xf32>, vector<32x33xf32>, vector<16x33xf32> -> vector<16x33xf32>
    %31 = vector.extract_strided_slice %30 {offsets = [0, 0], sizes = [8, 32], strides = [1, 1]} : vector<16x33xf32> to vector<8x32xf32>
    %32 = vector.extract_strided_slice %30 {offsets = [0, 32], sizes = [8, 1], strides = [1, 1]} : vector<16x33xf32> to vector<8x1xf32>
    %33 = arith.negf %32 : vector<8x1xf32>
    %34 = math.exp %33 : vector<8x1xf32>
    %cst_10 = arith.constant 1.000000e+00 : f32
    %35 = vector.broadcast %cst_10 : f32 to vector<8x1xf32>
    %36 = arith.addf %35, %34 : vector<8x1xf32>
    %37 = arith.divf %35, %36 : vector<8x1xf32>
    %38 = vector.extract_strided_slice %30 {offsets = [8, 0], sizes = [8, 32], strides = [1, 1]} : vector<16x33xf32> to vector<8x32xf32>
    %39 = math.exp %38 : vector<8x32xf32>
    %40 = vector.broadcast %37 : vector<8x1xf32> to vector<8x32xf32>
    %41 = arith.mulf %40, %31 : vector<8x32xf32>
    %cst_11 = arith.constant 1.000000e+00 : f32
    %42 = vector.broadcast %cst_11 : f32 to vector<8x1xf32>
    %43 = arith.subf %42, %37 : vector<8x1xf32>
    %44 = vector.broadcast %43 : vector<8x1xf32> to vector<8x32xf32>
    %45 = arith.mulf %44, %39 : vector<8x32xf32>
    %46 = arith.addf %41, %45 : vector<8x32xf32>
    %c0_12 = arith.constant 0 : index
    %c0_13 = arith.constant 0 : index
    %47 = vector.load %arg4[%c0_12, %c0_13] : memref<32x9xf32, #tpu.memory_space<vmem>>, vector<32x9xf32>
    %48 = math.absf %46 : vector<8x32xf32>
    %cst_14 = arith.constant 9.99999993E-9 : f32
    %49 = vector.broadcast %cst_14 : f32 to vector<8x32xf32>
    %50 = arith.addf %48, %49 : vector<8x32xf32>
    %51 = math.log %50 : vector<8x32xf32>
    %52 = tpu.concatenate %46, %51 in 0 : vector<8x32xf32>, vector<8x32xf32> -> vector<16x32xf32>
    %cst_15 = arith.constant dense<0.000000e+00> : vector<16x9xf32>
    %53 = tpu.matmul %52, %47, %cst_15 {dimension_numbers = #tpu.dot_dimension_numbers<[1], [0], [0], [1], [0, 0, 1, 1], [], []>} : vector<16x32xf32>, vector<32x9xf32>, vector<16x9xf32> -> vector<16x9xf32>
    %54 = vector.extract_strided_slice %53 {offsets = [0, 0], sizes = [8, 8], strides = [1, 1]} : vector<16x9xf32> to vector<8x8xf32>
    %55 = vector.extract_strided_slice %53 {offsets = [0, 8], sizes = [8, 1], strides = [1, 1]} : vector<16x9xf32> to vector<8x1xf32>
    %56 = arith.negf %55 : vector<8x1xf32>
    %57 = math.exp %56 : vector<8x1xf32>
    %cst_16 = arith.constant 1.000000e+00 : f32
    %58 = vector.broadcast %cst_16 : f32 to vector<8x1xf32>
    %59 = arith.addf %58, %57 : vector<8x1xf32>
    %60 = arith.divf %58, %59 : vector<8x1xf32>
    %61 = vector.extract_strided_slice %53 {offsets = [8, 0], sizes = [8, 8], strides = [1, 1]} : vector<16x9xf32> to vector<8x8xf32>
    %62 = math.exp %61 : vector<8x8xf32>
    %63 = vector.broadcast %60 : vector<8x1xf32> to vector<8x8xf32>
    %64 = arith.mulf %63, %54 : vector<8x8xf32>
    %cst_17 = arith.constant 1.000000e+00 : f32
    %65 = vector.broadcast %cst_17 : f32 to vector<8x1xf32>
    %66 = arith.subf %65, %60 : vector<8x1xf32>
    %67 = vector.broadcast %66 : vector<8x1xf32> to vector<8x8xf32>
    %68 = arith.mulf %67, %62 : vector<8x8xf32>
    %69 = arith.addf %64, %68 : vector<8x8xf32>
    %c0_18 = arith.constant 0 : index
    %c0_19 = arith.constant 0 : index
    %70 = vector.load %arg5[%c0_18, %c0_19] : memref<8x8xf32, #tpu.memory_space<vmem>>, vector<8x8xf32>
    tpu.vector_store %arg5[%c0_18, %c0_19], %69 {strides = array<i32>} : memref<8x8xf32, #tpu.memory_space<vmem>>, vector<8x8xf32>,
    return
  }
  func.func @transform_0(%arg0: i32) -> (i32, i32) {
    %c0_i32 = arith.constant 0 : i32
    %c0_i32_0 = arith.constant 0 : i32
    return %arg0, %c0_i32 : i32, i32
  }
  func.func @transform_1(%arg0: i32) -> (i32, i32) {
    %c0_i32 = arith.constant 0 : i32
    %c0_i32_0 = arith.constant 0 : i32
    %c0_i32_1 = arith.constant 0 : i32
    return %c0_i32, %c0_i32_0 : i32, i32
  }
  func.func @transform_2(%arg0: i32) -> (i32, i32) {
    %c0_i32 = arith.constant 0 : i32
    %c0_i32_0 = arith.constant 0 : i32
    %c0_i32_1 = arith.constant 0 : i32
    return %c0_i32, %c0_i32_0 : i32, i32
  }
  func.func @transform_3(%arg0: i32) -> (i32, i32) {
    %c0_i32 = arith.constant 0 : i32
    %c0_i32_0 = arith.constant 0 : i32
    %c0_i32_1 = arith.constant 0 : i32
    return %c0_i32, %c0_i32_0 : i32, i32
  }
  func.func @transform_4(%arg0: i32) -> (i32, i32) {
    %c0_i32 = arith.constant 0 : i32
    %c0_i32_0 = arith.constant 0 : i32
    return %arg0, %c0_i32 : i32, i32
  }
}

</mosaic_0001>

<llo_original>
// kernel: stacked_nalu_forward.1
$region0: #{stacked_nalu_forward.1}
  #allocation0 [shape = 'u32[]', space=smem, size = 0x4, offset = 0x4, fixed_abs, tag = 'smem constant byte address 0x4 - core index']
  #allocation1 [shape = 'u32[144,128]{1,0:T(1,128)}', space=vmem, size = 0x12000, scoped, tag = 'internal scratch']
  %s0 = inlined_call_operand.vmem [shape: f32[8,16], index: 0, kind: input, shape index: {}]
  %s1 = inlined_call_operand.vmem [shape: f32[16,33], index: 1, kind: input, shape index: {}]
  %s2 = inlined_call_operand.vmem [shape: f32[32,33], index: 2, kind: input, shape index: {}]
  %s3 = inlined_call_operand.vmem [shape: f32[32,9], index: 3, kind: input, shape index: {}]
  %s4 = inlined_call_operand.hbm [shape: f32[8,8], index: 4, kind: output, shape index: {}]
  %s5 = sld [smem:[#allocation0]]
  $region26: #{stacked_nalu_forward.1} parent=0
    _
  %s7 = ssub.s32 1, %s5
  %s8 = scalar_select 0, %s7, %s5
  $region1: #{stacked_nalu_forward.1} parent=0
    #allocation2 [shape = 'u8[4096]{0}', space=vmem, size = 0x1000, scoped, tag = 'output window, operand 0, single buffered']
    #allocation3 [shape = 's32[1]{0}', space=sflag, size = 0x4, scoped, tag = 'scoped memory for stacked_nalu_forward.1']
    %9 = vsyncpa [#allocation3], 0
    // Predicated region
    $region2: #{stacked_nalu_forward.1} parent=1 // pred_check
      _
    $region3: #{stacked_nalu_forward.1} parent=1 // pred_check_branch
      %11 = sbr.rel (0) target = $region5
    $region4: #{stacked_nalu_forward.1} parent=1 // pred_region
      _
    $region5: #{stacked_nalu_forward.1} parent=1 // pred_fallthru
      _
    // Predicated region
    $region6: #{stacked_nalu_forward.1} parent=1 // pred_check
      _
    $region7: #{stacked_nalu_forward.1} parent=1 // pred_check_branch
      %13 = sbr.rel (0) target = $region9
    $region8: #{stacked_nalu_forward.1} parent=1 // pred_region
      _
    $region9: #{stacked_nalu_forward.1} parent=1 // pred_fallthru
      _
    // Predicated region
    $region10: #{stacked_nalu_forward.1} parent=1 // pred_check
      _
    $region11: #{stacked_nalu_forward.1} parent=1 // pred_check_branch
      %15 = sbr.rel (0) target = $region13
    $region12: #{stacked_nalu_forward.1} parent=1 // pred_region
      _
    $region13: #{stacked_nalu_forward.1} parent=1 // pred_fallthru
      _
    // Predicated region
    $region14: #{stacked_nalu_forward.1} parent=1 // pred_check
      _
    $region15: #{stacked_nalu_forward.1} parent=1 // pred_check_branch
      %17 = sbr.rel (0) target = $region17
    $region16: #{stacked_nalu_forward.1} parent=1 // pred_region
      _
    $region17: #{stacked_nalu_forward.1} parent=1 // pred_fallthru
      _
    %v18 = vld [vmem:[%s0] sm:$0xff]
    %v19 = vld [vmem:[%s1] sm:$0xff]
    %v20 = vld [vmem:[%s1 + $0x8] sm:$0xff]
    %v21 = vand.u32 2147483647, %v18
    %v22 = vadd.f32 %v21, 1e-08
    %v23 = vlog2.pop %v22
    %v24 = vmul.f32 %v23, 0.6931472
    %vm25 = vcmask 130048
    %v27 = vsel %vm25, %v18, 0
    %v30 = vsel %vm25, %v24, 0
    %32 = vmatprep.subr.mxu0 0.0
    %33 = vmatpush1.msra.mxu0 %v19
    %34 = vmatprep.subr.mxu0 0.0
    %35 = vmatpush1.msra.mxu0 %v20
    %36 = vmatprep.subr.mxu0 0.0
    %37 = vmatpush1.msra.mxu0 0.0
    %38 = vmatprep.subr.mxu0 0.0
    %39 = vmatpush1.msra.mxu0 0.0
    %40 = vmatprep.subr.mxu0 0.0
    %41 = vmatpush1.msra.mxu0 0.0
    %42 = vmatprep.subr.mxu0 0.0
    %43 = vmatpush1.msra.mxu0 0.0
    %44 = vmatprep.subr.mxu0 0.0
    %45 = vmatpush1.msra.mxu0 0.0
    %46 = vmatprep.subr.mxu0 0.0
    %47 = vmatpush1.msra.mxu0 0.0
    %48 = vmatprep.subr.mxu0 0.0
    %49 = vmatpush1.msra.mxu0 0.0
    %50 = vmatprep.subr.mxu0 0.0
    %51 = vmatpush1.msra.mxu0 0.0
    %52 = vmatprep.subr.mxu0 0.0
    %53 = vmatpush1.msra.mxu0 0.0
    %54 = vmatprep.subr.mxu0 0.0
    %55 = vmatpush1.msra.mxu0 0.0
    %56 = vmatprep.subr.mxu0 0.0
    %57 = vmatpush1.msra.mxu0 0.0
    %58 = vmatprep.subr.mxu0 0.0
    %59 = vmatpush1.msra.mxu0 0.0
    %60 = vmatprep.subr.mxu0 0.0
    %61 = vmatpush1.msra.mxu0 0.0
    %62 = vmatprep.subr.mxu0 0.0
    %63 = vmatpush1.msra.mxu0 0.0
    %64 = vmatprep.subr.mxu0 0.0
    %65 = vmatpush1.msra.mxu0 0.0
    %66 = vmatprep.subr.mxu0 0.0
    %67 = vmatpush1.msra.mxu0 0.0
    %68 = vmatprep.subr.mxu0 0.0
    %69 = vmatpush1.msra.mxu0 0.0
    %70 = vmatprep.subr.mxu0 0.0
    %71 = vmatpush1.msra.mxu0 0.0
    %72 = vmatprep.subr.mxu0 0.0
    %73 = vmatpush1.msra.mxu0 0.0
    %74 = vmatprep.subr.mxu0 0.0
    %75 = vmatpush1.msra.mxu0 0.0
    %76 = vmatprep.subr.mxu0 0.0
    %77 = vmatpush1.msra.mxu0 0.0
    %78 = vmatprep.subr.mxu0 0.0
    %79 = vmatpush1.msra.mxu0 0.0
    %80 = vmatprep.subr.mxu0 0.0
    %81 = vmatpush1.msra.mxu0 0.0
    %82 = vmatprep.subr.mxu0 0.0
    %83 = vmatpush1.msra.mxu0 0.0
    %84 = vmatprep.subr.mxu0 0.0
    %85 = vmatpush1.msra.mxu0 0.0
    %86 = vmatprep.subr.mxu0 0.0
    %87 = vmatpush1.msra.mxu0 0.0
    %88 = vmatprep.subr.mxu0 0.0
    %89 = vmatpush1.msra.mxu0 0.0
    %90 = vmatprep.subr.mxu0 0.0
    %91 = vmatpush1.msra.mxu0 0.0
    %92 = vmatprep.subr.mxu0 0.0
    %93 = vmatpush1.msra.mxu0 0.0
    %94 = vmatprep.subr.mxu0 0.0
    %95 = vmatpush1.msra.mxu0 0.0
    %96 = vmatprep.mubr.f32.mxu0 0.0
    %97 = vmatmul.mubr.f32.gmra.mrb[0].mxu0 %v27
    %v98 = vpop.f32.mrb[0].mxu0
    %v99 = vadd.f32 0.0, %v98
    %v100 = vpop.f32.mrb[0].mxu0
    %101 = vmatprep.mubr.f32.mxu0 0.0
    %102 = vmatmul.mubr.f32.gmra.mrb[0].mxu0 %v30
    %v103 = vpop.f32.mrb[0].mxu0
    %v104 = vadd.f32 0.0, %v103
    %v105 = vpop.f32.mrb[0].mxu0
    %106 = vdwg.mxu0
    %v107 = vxor.u32 %v99, 2147483648
    %v108 = vmul.f32 %v107, 1.442695
    %v109 = vpow.pop %v108
    %v110 = vadd.f32 %v109, 1.0
    %v111 = vrcp.pop %v110
    %v112 = vmul.f32 1.0, %v111
    %v113 = vmul.f32 %v104, 1.442695
    %v114 = vpow.pop %v113
    %116 = vset.pattern.permute.xlu0 32
    %117 = vperm.xlu0 %116, %v112
    %v118 = vpop.permute.xlu0 %117
    %v120 = vmul.f32 %v118, %v99
    %v121 = vsub.f32 1.0, %v112
    %123 = vset.pattern.permute.xlu0 32
    %124 = vperm.xlu0 %123, %v121
    %v125 = vpop.permute.xlu0 %124
    %v127 = vmul.f32 %v125, %v114
    %v128 = vadd.f32 %v120, %v127
    %v129 = vld [vmem:[%s2] sm:$0xff]
    %v130 = vld [vmem:[%s2 + $0x8] sm:$0xff]
    %v131 = vld [vmem:[%s2 + $0x10] sm:$0xff]
    %v132 = vld [vmem:[%s2 + $0x18] sm:$0xff]
    %v133 = vand.u32 2147483647, %v128
    %v134 = vadd.f32 %v133, 1e-08
    %v135 = vlog2.pop %v134
    %v136 = vmul.f32 %v135, 0.6931472
    %vm137 = vcmask 261120
    %v139 = vsel %vm137, %v128, 0
    %v142 = vsel %vm137, %v136, 0
    %144 = vmatprep.subr.mxu0 0.0
    %145 = vmatpush1.msra.mxu0 %v129
    %146 = vmatprep.subr.mxu0 0.0
    %147 = vmatpush1.msra.mxu0 %v130
    %148 = vmatprep.subr.mxu0 0.0
    %149 = vmatpush1.msra.mxu0 %v131
    %150 = vmatprep.subr.mxu0 0.0
    %151 = vmatpush1.msra.mxu0 %v132
    %152 = vmatprep.subr.mxu0 0.0
    %153 = vmatpush1.msra.mxu0 0.0
    %154 = vmatprep.subr.mxu0 0.0
    %155 = vmatpush1.msra.mxu0 0.0
    %156 = vmatprep.subr.mxu0 0.0
    %157 = vmatpush1.msra.mxu0 0.0
    %158 = vmatprep.subr.mxu0 0.0
    %159 = vmatpush1.msra.mxu0 0.0
    %160 = vmatprep.subr.mxu0 0.0
    %161 = vmatpush1.msra.mxu0 0.0
    %162 = vmatprep.subr.mxu0 0.0
    %163 = vmatpush1.msra.mxu0 0.0
    %164 = vmatprep.subr.mxu0 0.0
    %165 = vmatpush1.msra.mxu0 0.0
    %166 = vmatprep.subr.mxu0 0.0
    %167 = vmatpush1.msra.mxu0 0.0
    %168 = vmatprep.subr.mxu0 0.0
    %169 = vmatpush1.msra.mxu0 0.0
    %170 = vmatprep.subr.mxu0 0.0
    %171 = vmatpush1.msra.mxu0 0.0
    %172 = vmatprep.subr.mxu0 0.0
    %173 = vmatpush1.msra.mxu0 0.0
    %174 = vmatprep.subr.mxu0 0.0
    %175 = vmatpush1.msra.mxu0 0.0
    %176 = vmatprep.subr.mxu0 0.0
    %177 = vmatpush1.msra.mxu0 0.0
    %178 = vmatprep.subr.mxu0 0.0
    %179 = vmatpush1.msra.mxu0 0.0
    %180 = vmatprep.subr.mxu0 0.0
    %181 = vmatpush1.msra.mxu0 0.0
    %182 = vmatprep.subr.mxu0 0.0
    %183 = vmatpush1.msra.mxu0 0.0
    %184 = vmatprep.subr.mxu0 0.0
    %185 = vmatpush1.msra.mxu0 0.0
    %186 = vmatprep.subr.mxu0 0.0
    %187 = vmatpush1.msra.mxu0 0.0
    %188 = vmatprep.subr.mxu0 0.0
    %189 = vmatpush1.msra.mxu0 0.0
    %190 = vmatprep.subr.mxu0 0.0
    %191 = vmatpush1.msra.mxu0 0.0
    %192 = vmatprep.subr.mxu0 0.0
    %193 = vmatpush1.msra.mxu0 0.0
    %194 = vmatprep.subr.mxu0 0.0
    %195 = vmatpush1.msra.mxu0 0.0
    %196 = vmatprep.subr.mxu0 0.0
    %197 = vmatpush1.msra.mxu0 0.0
    %198 = vmatprep.subr.mxu0 0.0
    %199 = vmatpush1.msra.mxu0 0.0
    %200 = vmatprep.subr.mxu0 0.0
    %201 = vmatpush1.msra.mxu0 0.0
    %202 = vmatprep.subr.mxu0 0.0
    %203 = vmatpush1.msra.mxu0 0.0
    %204 = vmatprep.subr.mxu0 0.0
    %205 = vmatpush1.msra.mxu0 0.0
    %206 = vmatprep.subr.mxu0 0.0
    %207 = vmatpush1.msra.mxu0 0.0
    %208 = vmatprep.mubr.f32.mxu0 0.0
    %209 = vmatmul.mubr.f32.gmra.mrb[0].mxu0 %v139
    %v210 = vpop.f32.mrb[0].mxu0
    %v211 = vadd.f32 0.0, %v210
    %v212 = vpop.f32.mrb[0].mxu0
    %213 = vmatprep.mubr.f32.mxu0 0.0
    %214 = vmatmul.mubr.f32.gmra.mrb[0].mxu0 %v142
    %v215 = vpop.f32.mrb[0].mxu0
    %v216 = vadd.f32 0.0, %v215
    %v217 = vpop.f32.mrb[0].mxu0
    %218 = vdwg.mxu0
    %v219 = vxor.u32 %v211, 2147483648
    %v220 = vmul.f32 %v219, 1.442695
    %v221 = vpow.pop %v220
    %v222 = vadd.f32 %v221, 1.0
    %v223 = vrcp.pop %v222
    %v224 = vmul.f32 1.0, %v223
    %v225 = vmul.f32 %v216, 1.442695
    %v226 = vpow.pop %v225
    %228 = vset.pattern.permute.xlu0 32
    %229 = vperm.xlu0 %228, %v224
    %v230 = vpop.permute.xlu0 %229
    %v232 = vmul.f32 %v230, %v211
    %v233 = vsub.f32 1.0, %v224
    %235 = vset.pattern.permute.xlu0 32
    %236 = vperm.xlu0 %235, %v233
    %v237 = vpop.permute.xlu0 %236
    %v239 = vmul.f32 %v237, %v226
    %v240 = vadd.f32 %v232, %v239
    %v241 = vld [vmem:[%s3] sm:$0xff]
    %v242 = vld [vmem:[%s3 + $0x8] sm:$0xff]
    %v243 = vld [vmem:[%s3 + $0x10] sm:$0xff]
    %v244 = vld [vmem:[%s3 + $0x18] sm:$0xff]
    %v245 = vand.u32 2147483647, %v240
    %v246 = vadd.f32 %v245, 1e-08
    %v247 = vlog2.pop %v246
    %v248 = vmul.f32 %v247, 0.6931472
    %v250 = vsel %vm137, %v240, 0
    %v253 = vsel %vm137, %v248, 0
    %255 = vmatprep.subr.mxu0 0.0
    %256 = vmatpush1.msra.mxu0 %v241
    %257 = vmatprep.subr.mxu0 0.0
    %258 = vmatpush1.msra.mxu0 %v242
    %259 = vmatprep.subr.mxu0 0.0
    %260 = vmatpush1.msra.mxu0 %v243
    %261 = vmatprep.subr.mxu0 0.0
    %262 = vmatpush1.msra.mxu0 %v244
    %263 = vmatprep.subr.mxu0 0.0
    %264 = vmatpush1.msra.mxu0 0.0
    %265 = vmatprep.subr.mxu0 0.0
    %266 = vmatpush1.msra.mxu0 0.0
    %267 = vmatprep.subr.mxu0 0.0
    %268 = vmatpush1.msra.mxu0 0.0
    %269 = vmatprep.subr.mxu0 0.0
    %270 = vmatpush1.msra.mxu0 0.0
    %271 = vmatprep.subr.mxu0 0.0
    %272 = vmatpush1.msra.mxu0 0.0
    %273 = vmatprep.subr.mxu0 0.0
    %274 = vmatpush1.msra.mxu0 0.0
    %275 = vmatprep.subr.mxu0 0.0
    %276 = vmatpush1.msra.mxu0 0.0
    %277 = vmatprep.subr.mxu0 0.0
    %278 = vmatpush1.msra.mxu0 0.0
    %279 = vmatprep.subr.mxu0 0.0
    %280 = vmatpush1.msra.mxu0 0.0
    %281 = vmatprep.subr.mxu0 0.0
    %282 = vmatpush1.msra.mxu0 0.0
    %283 = vmatprep.subr.mxu0 0.0
    %284 = vmatpush1.msra.mxu0 0.0
    %285 = vmatprep.subr.mxu0 0.0
    %286 = vmatpush1.msra.mxu0 0.0
    %287 = vmatprep.subr.mxu0 0.0
    %288 = vmatpush1.msra.mxu0 0.0
    %289 = vmatprep.subr.mxu0 0.0
    %290 = vmatpush1.msra.mxu0 0.0
    %291 = vmatprep.subr.mxu0 0.0
    %292 = vmatpush1.msra.mxu0 0.0
    %293 = vmatprep.subr.mxu0 0.0
    %294 = vmatpush1.msra.mxu0 0.0
    %295 = vmatprep.subr.mxu0 0.0
    %296 = vmatpush1.msra.mxu0 0.0
    %297 = vmatprep.subr.mxu0 0.0
    %298 = vmatpush1.msra.mxu0 0.0
    %299 = vmatprep.subr.mxu0 0.0
    %300 = vmatpush1.msra.mxu0 0.0
    %301 = vmatprep.subr.mxu0 0.0
    %302 = vmatpush1.msra.mxu0 0.0
    %303 = vmatprep.subr.mxu0 0.0
    %304 = vmatpush1.msra.mxu0 0.0
    %305 = vmatprep.subr.mxu0 0.0
    %306 = vmatpush1.msra.mxu0 0.0
    %307 = vmatprep.subr.mxu0 0.0
    %308 = vmatpush1.msra.mxu0 0.0
    %309 = vmatprep.subr.mxu0 0.0
    %310 = vmatpush1.msra.mxu0 0.0
    %311 = vmatprep.subr.mxu0 0.0
    %312 = vmatpush1.msra.mxu0 0.0
    %313 = vmatprep.subr.mxu0 0.0
    %314 = vmatpush1.msra.mxu0 0.0
    %315 = vmatprep.subr.mxu0 0.0
    %316 = vmatpush1.msra.mxu0 0.0
    %317 = vmatprep.subr.mxu0 0.0
    %318 = vmatpush1.msra.mxu0 0.0
    %319 = vmatprep.mubr.f32.mxu0 0.0
    %320 = vmatmul.mubr.f32.gmra.mrb[0].mxu0 %v250
    %v321 = vpop.f32.mrb[0].mxu0
    %v322 = vadd.f32 0.0, %v321
    %v323 = vpop.f32.mrb[0].mxu0
    %324 = vmatprep.mubr.f32.mxu0 0.0
    %325 = vmatmul.mubr.f32.gmra.mrb[0].mxu0 %v253
    %v326 = vpop.f32.mrb[0].mxu0
    %v327 = vadd.f32 0.0, %v326
    %v328 = vpop.f32.mrb[0].mxu0
    %329 = vdwg.mxu0
    %v330 = vxor.u32 %v322, 2147483648
    %v331 = vmul.f32 %v330, 1.442695
    %v332 = vpow.pop %v331
    %v333 = vadd.f32 %v332, 1.0
    %v334 = vrcp.pop %v333
    %v335 = vmul.f32 1.0, %v334
    %v336 = vmul.f32 %v327, 1.442695
    %v337 = vpow.pop %v336
    %339 = vset.pattern.permute.xlu0 8
    %340 = vperm.xlu0 %339, %v335
    %v341 = vpop.permute.xlu0 %340
    %v343 = vmul.f32 %v341, %v322
    %v344 = vsub.f32 1.0, %v335
    %346 = vset.pattern.permute.xlu0 8
    %347 = vperm.xlu0 %346, %v344
    %v348 = vpop.permute.xlu0 %347
    %v350 = vmul.f32 %v348, %v337
    %v351 = vadd.f32 %v343, %v350
    %vm352 = vcmask 64512
    %353 = vst.msk [vmem:[#allocation2] sm:$0xff] %vm352, %v351
    // Predicated region
    $region18: #{stacked_nalu_forward.1} parent=1 // pred_check
      _
    $region19: #{stacked_nalu_forward.1} parent=1 // pred_check_branch
      %355 = sbr.rel (0) target = $region21
    $region20: #{stacked_nalu_forward.1} parent=1 // pred_region
      %s357 = ssub.s32 128, 128
      %358 = vsyncadd [#allocation3], %s357
      %s360 = sshll.u32 [#allocation2], 4
      %s361 = int_to_ptr.vmem [resolvable:$true] %s360
      %363 = dma.vmem_to_hbm [thread:$0]  %s361, 128, %s4, [#allocation3]
    $region21: #{stacked_nalu_forward.1} parent=1 // pred_fallthru
      _
    // Predicated region
    $region22: #{stacked_nalu_forward.1} parent=1 // pred_check
      _
    $region23: #{stacked_nalu_forward.1} parent=1 // pred_check_branch
      %365 = sbr.rel (0) target = $region25
    $region24: #{stacked_nalu_forward.1} parent=1 // pred_region
      %366 = dma.done [#allocation3], 128
    $region25: #{stacked_nalu_forward.1} parent=1 // pred_fallthru
      _
    %367 = vsyncpa [#allocation3], 1

</llo_original>
